<compile_context>
chip_gen: v7x
topology: tpu7x:2x2x1
jax: 0.10.0
libtpu: 0.0.40
codegen_flags: <defaults>
</compile_context>

<pallas_src>
import jax
import jax.numpy as jnp
from jax.experimental import pallas as pl
from jax.experimental.pallas import tpu as pltpu

HID1 = 400          # logical hidden sizes (torch module)
HID2 = 300
HID1_PAD = 512      # padded to multiples of 128 lanes
HID2_PAD = 384


def _round_up(x, m):
    return ((x + m - 1) // m) * m


def _critic_kernel(x_ref, a_ref,
                   w1_ref, b1_ref,
                   w2_ref, b2_ref,
                   w3_ref, b3_ref,
                   out_ref,
                   slab_ref):
    # ---- Layer 1: obs_net = Linear(obs, 400[->512]) + ReLU -----------------
    # bf16 operands, f32 accumulation; bias + ReLU in f32.
    h1 = jnp.dot(x_ref[...].astype(jnp.bfloat16), w1_ref[...],
                 preferred_element_type=jnp.float32)
    h1 = jnp.maximum(h1 + b1_ref[...], 0.0)          # (TB, 512); cols >=400 are 0

    # ---- cat([h1, a], dim=1) as a single VMEM slab -------------------------
    act_size = a_ref.shape[1]
    slab_ref[...] = h1                                 # h1 in cols [0:400], 0-pad after
    slab_ref[:, HID1:HID1 + act_size] = a_ref[...]     # a in cols [400:400+act]

    # ---- Layer 2: Linear(400+act -> 300[->384]) + ReLU, single K=512 matmul -
    h2 = jnp.dot(slab_ref[...].astype(jnp.bfloat16), w2_ref[...],
                 preferred_element_type=jnp.float32)
    h2 = jnp.maximum(h2 + b2_ref[...], 0.0)            # (TB, 384); cols >=300 are 0

    # ---- Layer 3: Linear(300 -> 1) done on VPU/XLU (N=1 matmul is MXU waste) -
    out_ref[...] = (jnp.sum(h2 * w3_ref[...], axis=-1, keepdims=True)
                    + b3_ref[0, 0])


def ddpg_critic_forward(x, a, packed_params, *, block_b=512):
    """x: (B, obs_size) f32, a: (B, act_size) f32 -> (B, 1) f32."""
    B, obs_size = x.shape
    act_size = a.shape[1]
    w1p, b1p, w2p, b2p, w3row, b3 = packed_params

    # Batch tile: multiple of 8 sublanes, capped so VMEM stays small on every chip.
    TB = min(block_b, _round_up(B, 8))
    B_pad = _round_up(B, TB)
    if B_pad != B:
        x = jnp.pad(x, ((0, B_pad - B), (0, 0)))
        a = jnp.pad(a, ((0, B_pad - B), (0, 0)))
    grid = (B_pad // TB,)

    def batch_map(i):   # batch-tiled arrays
        return (i, 0)

    def whole_map(i):   # weights/biases: same block every step (VMEM-resident)
        return (0, 0)

    in_specs = [
        pl.BlockSpec((TB, obs_size), batch_map),                        # x
        pl.BlockSpec((TB, act_size), batch_map),                        # a
        pl.BlockSpec((obs_size, HID1_PAD), whole_map),                  # w1 (bf16)
        pl.BlockSpec((1, HID1_PAD), whole_map),                         # b1 (f32)
        pl.BlockSpec((HID1_PAD, HID2_PAD), whole_map),                  # w2 (bf16)
        pl.BlockSpec((1, HID2_PAD), whole_map),                         # b2 (f32)
        pl.BlockSpec((1, HID2_PAD), whole_map),                         # w3 row (f32)
        pl.BlockSpec((1, 1), whole_map, memory_space=pltpu.SMEM),       # b3 scalar
    ]
    out_specs = pl.BlockSpec((TB, 1), batch_map)

    flops = 2 * B_pad * (obs_size * HID1_PAD + HID1_PAD * HID2_PAD + HID2_PAD)
    bytes_accessed = int(
        x.size * x.dtype.itemsize + a.size * a.dtype.itemsize + B_pad * 4
        + sum(int(p.size) * p.dtype.itemsize for p in packed_params))
    cost = pl.CostEstimate(flops=int(flops), transcendentals=0,
                           bytes_accessed=bytes_accessed)

    out = pl.pallas_call(
        _critic_kernel,
        out_shape=jax.ShapeDtypeStruct((B_pad, 1), jnp.float32),
        grid=grid,
        in_specs=in_specs,
        out_specs=out_specs,
        scratch_shapes=[pltpu.VMEM((TB, HID1_PAD), jnp.float32)],  # cat([h1, a]) slab
        compiler_params=pltpu.CompilerParams(
            dimension_semantics=("parallel",),   # megacore-shard batch on v7x
        ),
        cost_estimate=cost,
    )(x, a, w1p, b1p, w2p, b2p, w3row, b3)

    return out[:B]


def init_params(key, obs_size, act_size):
    """Synthetic parameters matching DDPGCritic shapes, stored as (in, out)."""
    ks = jax.random.split(key, 7)
    s1 = 1.0 / jnp.sqrt(obs_size)
    s2 = 1.0 / jnp.sqrt(HID1 + act_size)
    s3 = 1.0 / jnp.sqrt(HID2)
    w1 = jax.random.uniform(ks[0], (obs_size, HID1), jnp.float32, -s1, s1)
    b1 = jax.random.uniform(ks[1], (1, HID1), jnp.float32, -s1, s1)
    w2o = jax.random.uniform(ks[2], (HID1, HID2), jnp.float32, -s2, s2)
    w2a = jax.random.uniform(ks[3], (act_size, HID2), jnp.float32, -s2, s2)
    b2 = jax.random.uniform(ks[4], (1, HID2), jnp.float32, -s2, s2)
    w3 = jax.random.uniform(ks[5], (HID2, 1), jnp.float32, -s3, s3)
    b3 = jax.random.uniform(ks[6], (1, 1), jnp.float32, -s3, s3)
    return (w1, b1, w2o, w2a, b2, w3, b3)


def pack_params(params, act_size):
    """Zero-pad hidden dims to 512/384, fuse W2 obs/act blocks, bf16 weights."""
    w1, b1, w2o, w2a, b2, w3, b3 = params
    obs_size = w1.shape[0]
    w1p = jnp.zeros((obs_size, HID1_PAD), jnp.float32).at[:, :HID1].set(w1)
    b1p = jnp.zeros((1, HID1_PAD), jnp.float32).at[:, :HID1].set(b1)
    w2p = jnp.zeros((HID1_PAD, HID2_PAD), jnp.float32)
    w2p = w2p.at[:HID1, :HID2].set(w2o)
    w2p = w2p.at[HID1:HID1 + act_size, :HID2].set(w2a)   # cat rows for `a`
    b2p = jnp.zeros((1, HID2_PAD), jnp.float32).at[:, :HID2].set(b2)
    w3row = jnp.zeros((1, HID2_PAD), jnp.float32).at[:, :HID2].set(w3.T)
    return (w1p.astype(jnp.bfloat16), b1p,
            w2p.astype(jnp.bfloat16), b2p,
            w3row, b3)


def reference_forward(x, a, params):
    """Pure-JAX reference with the same bf16-operand / f32-accum contract."""
    w1, b1, w2o, w2a, b2, w3, b3 = params
    w1b = w1.astype(jnp.bfloat16)
    w2b = jnp.concatenate([w2o, w2a], axis=0).astype(jnp.bfloat16)
    h1 = jnp.maximum(
        jnp.dot(x.astype(jnp.bfloat16), w1b, preferred_element_type=jnp.float32) + b1,
        0.0)
    cat = jnp.concatenate([h1, a], axis=1)
    h2 = jnp.maximum(
        jnp.dot(cat.astype(jnp.bfloat16), w2b, preferred_element_type=jnp.float32) + b2,
        0.0)
    return h2 @ w3 + b3


if __name__ == "__main__":
    B, obs_size, act_size = 2, 16, 8
    key = jax.random.PRNGKey(0)
    kx, ka, kp = jax.random.split(key, 3)

    x = jax.random.normal(kx, (B, obs_size), jnp.float32)
    a = jax.random.normal(ka, (B, act_size), jnp.float32)
    params = init_params(kp, obs_size, act_size)
    packed = pack_params(params, act_size)

    out = jax.block_until_ready(ddpg_critic_forward(x, a, packed))
    ref = jax.block_until_ready(reference_forward(x, a, params))

    assert out.shape == (B, 1), out.shape
    assert jnp.allclose(out, ref, atol=2e-3, rtol=2e-3), (out, ref)
    print("KERNEL_OK")
</pallas_src>

<mosaic_0001>
module attributes {stable_mosaic.version = 11 : i64} {
  func.func @_critic_kernel(%arg0: i32, %arg1: memref<8x16xf32, #tpu.memory_space<vmem>>, %arg2: memref<8x8xf32, #tpu.memory_space<vmem>>, %arg3: memref<16x512xbf16, #tpu.memory_space<vmem>>, %arg4: memref<1x512xf32, #tpu.memory_space<vmem>>, %arg5: memref<512x384xbf16, #tpu.memory_space<vmem>>, %arg6: memref<1x384xf32, #tpu.memory_space<vmem>>, %arg7: memref<1x384xf32, #tpu.memory_space<vmem>>, %arg8: memref<1x1xf32, #tpu.memory_space<smem>>, %arg9: memref<8x1xf32, #tpu.memory_space<vmem>>, %arg10: memref<8x512xf32, #tpu.memory_space<vmem>>) attributes {dimension_semantics = [#tpu.dimension_semantics<parallel>], iteration_bounds = array<i64: 1>, scalar_prefetch = 0 : i64, scratch_operands = 1 : i64, tpu.core_type = #tpu.core_type<tc>, window_params = [{transform_indices = @transform_0, window_bounds = array<i64: 8, 16>}, {transform_indices = @transform_1, window_bounds = array<i64: 8, 8>}, {pipeline_mode = #tpu.pipeline_mode<synchronous>, transform_indices = @transform_2, window_bounds = array<i64: 16, 512>}, {pipeline_mode = #tpu.pipeline_mode<synchronous>, transform_indices = @transform_3, window_bounds = array<i64: 1, 512>}, {pipeline_mode = #tpu.pipeline_mode<synchronous>, transform_indices = @transform_4, window_bounds = array<i64: 512, 384>}, {pipeline_mode = #tpu.pipeline_mode<synchronous>, transform_indices = @transform_5, window_bounds = array<i64: 1, 384>}, {pipeline_mode = #tpu.pipeline_mode<synchronous>, transform_indices = @transform_6, window_bounds = array<i64: 1, 384>}, {transform_indices = @transform_7, window_bounds = array<i64: 1, 1>}, {transform_indices = @transform_8, window_bounds = array<i64: 8, 1>}]} {
    %c0 = arith.constant 0 : index
    %c0_0 = arith.constant 0 : index
    %0 = vector.load %arg1[%c0, %c0_0] : memref<8x16xf32, #tpu.memory_space<vmem>>, vector<8x16xf32>
    %1 = arith.truncf %0 : vector<8x16xf32> to vector<8x16xbf16>
    %c0_1 = arith.constant 0 : index
    %c0_2 = arith.constant 0 : index
    %2 = vector.load %arg3[%c0_1, %c0_2] : memref<16x512xbf16, #tpu.memory_space<vmem>>, vector<16x512xbf16>
    %cst = arith.constant dense<0.000000e+00> : vector<8x512xf32>
    %3 = tpu.matmul %1, %2, %cst {dimension_numbers = #tpu.dot_dimension_numbers<[1], [0], [0], [1], [0, 0, 1, 1], [], []>} : vector<8x16xbf16>, vector<16x512xbf16>, vector<8x512xf32> -> vector<8x512xf32>
    %c0_3 = arith.constant 0 : index
    %c0_4 = arith.constant 0 : index
    %4 = vector.load %arg4[%c0_3, %c0_4] : memref<1x512xf32, #tpu.memory_space<vmem>>, vector<1x512xf32>
    %5 = vector.broadcast %4 : vector<1x512xf32> to vector<8x512xf32>
    %6 = arith.addf %3, %5 : vector<8x512xf32>
    %cst_5 = arith.constant 0.000000e+00 : f32
    %7 = vector.broadcast %cst_5 : f32 to vector<8x512xf32>
    %8 = arith.maximumf %6, %7 : vector<8x512xf32>
    %c0_6 = arith.constant 0 : index
    %c0_7 = arith.constant 0 : index
    %9 = vector.load %arg10[%c0_6, %c0_7] : memref<8x512xf32, #tpu.memory_space<vmem>>, vector<8x512xf32>
    tpu.vector_store %arg10[%c0_6, %c0_7], %8 {strides = array<i32>} : memref<8x512xf32, #tpu.memory_space<vmem>>, vector<8x512xf32>,
    %c0_8 = arith.constant 0 : index
    %c0_9 = arith.constant 0 : index
    %10 = vector.load %arg2[%c0_8, %c0_9] : memref<8x8xf32, #tpu.memory_space<vmem>>, vector<8x8xf32>
    %c0_10 = arith.constant 0 : index
    %c400 = arith.constant 400 : index
    %11 = vector.load %arg10[%c0_10, %c400] : memref<8x512xf32, #tpu.memory_space<vmem>>, vector<8x8xf32>
    tpu.vector_store %arg10[%c0_10, %c400], %10 {strides = array<i32>} : memref<8x512xf32, #tpu.memory_space<vmem>>, vector<8x8xf32>,
    %c0_11 = arith.constant 0 : index
    %c0_12 = arith.constant 0 : index
    %12 = vector.load %arg10[%c0_11, %c0_12] : memref<8x512xf32, #tpu.memory_space<vmem>>, vector<8x512xf32>
    %13 = arith.truncf %12 : vector<8x512xf32> to vector<8x512xbf16>
    %c0_13 = arith.constant 0 : index
    %c0_14 = arith.constant 0 : index
    %14 = vector.load %arg5[%c0_13, %c0_14] : memref<512x384xbf16, #tpu.memory_space<vmem>>, vector<512x384xbf16>
    %cst_15 = arith.constant dense<0.000000e+00> : vector<8x384xf32>
    %15 = tpu.matmul %13, %14, %cst_15 {dimension_numbers = #tpu.dot_dimension_numbers<[1], [0], [0], [1], [0, 0, 1, 1], [], []>} : vector<8x512xbf16>, vector<512x384xbf16>, vector<8x384xf32> -> vector<8x384xf32>
    %c0_16 = arith.constant 0 : index
    %c0_17 = arith.constant 0 : index
    %16 = vector.load %arg6[%c0_16, %c0_17] : memref<1x384xf32, #tpu.memory_space<vmem>>, vector<1x384xf32>
    %17 = vector.broadcast %16 : vector<1x384xf32> to vector<8x384xf32>
    %18 = arith.addf %15, %17 : vector<8x384xf32>
    %cst_18 = arith.constant 0.000000e+00 : f32
    %19 = vector.broadcast %cst_18 : f32 to vector<8x384xf32>
    %20 = arith.maximumf %18, %19 : vector<8x384xf32>
    %c0_19 = arith.constant 0 : index
    %c0_20 = arith.constant 0 : index
    %21 = vector.load %arg7[%c0_19, %c0_20] : memref<1x384xf32, #tpu.memory_space<vmem>>, vector<1x384xf32>
    %22 = vector.broadcast %21 : vector<1x384xf32> to vector<8x384xf32>
    %23 = arith.mulf %20, %22 : vector<8x384xf32>
    %cst_21 = arith.constant dense<0.000000e+00> : vector<8xf32>
    %24 = vector.multi_reduction <add>, %23, %cst_21 [1] : vector<8x384xf32> to vector<8xf32>
    %25 = vector.shape_cast %24 : vector<8xf32> to vector<8x1xf32>
    %c0_22 = arith.constant 0 : index
    %c0_23 = arith.constant 0 : index
    %26 = memref.load %arg8[%c0_22, %c0_23] : memref<1x1xf32, #tpu.memory_space<smem>>
    %27 = vector.broadcast %26 : f32 to vector<8x1xf32>
    %28 = arith.addf %25, %27 : vector<8x1xf32>
    %c0_24 = arith.constant 0 : index
    %c0_25 = arith.constant 0 : index
    %29 = vector.load %arg9[%c0_24, %c0_25] : memref<8x1xf32, #tpu.memory_space<vmem>>, vector<8x1xf32>
    tpu.vector_store %arg9[%c0_24, %c0_25], %28 {strides = array<i32>} : memref<8x1xf32, #tpu.memory_space<vmem>>, vector<8x1xf32>,
    return
  }
  func.func @transform_0(%arg0: i32) -> (i32, i32) {
    %c0_i32 = arith.constant 0 : i32
    %c0_i32_0 = arith.constant 0 : i32
    return %arg0, %c0_i32 : i32, i32
  }
  func.func @transform_1(%arg0: i32) -> (i32, i32) {
    %c0_i32 = arith.constant 0 : i32
    %c0_i32_0 = arith.constant 0 : i32
    return %arg0, %c0_i32 : i32, i32
  }
  func.func @transform_2(%arg0: i32) -> (i32, i32) {
    %c0_i32 = arith.constant 0 : i32
    %c0_i32_0 = arith.constant 0 : i32
    %c0_i32_1 = arith.constant 0 : i32
    return %c0_i32, %c0_i32_0 : i32, i32
  }
  func.func @transform_3(%arg0: i32) -> (i32, i32) {
    %c0_i32 = arith.constant 0 : i32
    %c0_i32_0 = arith.constant 0 : i32
    %c0_i32_1 = arith.constant 0 : i32
    return %c0_i32, %c0_i32_0 : i32, i32
  }
  func.func @transform_4(%arg0: i32) -> (i32, i32) {
    %c0_i32 = arith.constant 0 : i32
    %c0_i32_0 = arith.constant 0 : i32
    %c0_i32_1 = arith.constant 0 : i32
    return %c0_i32, %c0_i32_0 : i32, i32
  }
  func.func @transform_5(%arg0: i32) -> (i32, i32) {
    %c0_i32 = arith.constant 0 : i32
    %c0_i32_0 = arith.constant 0 : i32
    %c0_i32_1 = arith.constant 0 : i32
    return %c0_i32, %c0_i32_0 : i32, i32
  }
  func.func @transform_6(%arg0: i32) -> (i32, i32) {
    %c0_i32 = arith.constant 0 : i32
    %c0_i32_0 = arith.constant 0 : i32
    %c0_i32_1 = arith.constant 0 : i32
    return %c0_i32, %c0_i32_0 : i32, i32
  }
  func.func @transform_7(%arg0: i32) -> (i32, i32) {
    %c0_i32 = arith.constant 0 : i32
    %c0_i32_0 = arith.constant 0 : i32
    %c0_i32_1 = arith.constant 0 : i32
    return %c0_i32, %c0_i32_0 : i32, i32
  }
  func.func @transform_8(%arg0: i32) -> (i32, i32) {
    %c0_i32 = arith.constant 0 : i32
    %c0_i32_0 = arith.constant 0 : i32
    return %arg0, %c0_i32 : i32, i32
  }
}

</mosaic_0001>

<llo_original>
// kernel: tpu_custom_call.1
$region0: #{tpu_custom_call.1}
  #allocation0 [shape = 'u32[]', space=smem, size = 0x4, offset = 0x4, fixed_abs, tag = 'smem constant byte address 0x4 - core index']
  #allocation1 [shape = 'u32[144,128]{1,0:T(1,128)}', space=vmem, size = 0x12000, scoped, tag = 'internal scratch']
  #allocation2 [shape = 'f32[8,512]{1,0:T(8,128)}', space=vmem, size = 0x4000, scoped, tag = 'scratch operand']
  #allocation3 [shape = 'f32[1,1]{1,0:T(1,128)S(6)}', space=smem, size = 0x200, scoped, tag = 'scoped memory for tpu_custom_call.1']
  %s0 = inlined_call_operand.hbm [shape: f32[8,16], index: 0, kind: input, shape index: {}]
  %s1 = inlined_call_operand.hbm [shape: f32[8,8], index: 1, kind: input, shape index: {}]
  %s2 = inlined_call_operand.hbm [shape: bf16[16,512], index: 2, kind: input, shape index: {}]
  %s3 = inlined_call_operand.vmem [shape: f32[1,512], index: 3, kind: input, shape index: {}]
  %s4 = inlined_call_operand.hbm [shape: bf16[512,384], index: 4, kind: input, shape index: {}]
  %s5 = inlined_call_operand.vmem [shape: f32[1,384], index: 5, kind: input, shape index: {}]
  %s6 = inlined_call_operand.vmem [shape: f32[1,384], index: 6, kind: input, shape index: {}]
  %s7 = inlined_call_operand.<no memory space> [shape: f32[1,1], index: 7, kind: input, shape index: {}]
  %s8 = inlined_call_operand.vmem [shape: f32[8,1], index: 8, kind: output, shape index: {}]
  %s9 = sld [smem:[#allocation0]]
  $region58: #{tpu_custom_call.1} parent=0
    _
  %s11 = ssub.s32 1, %s9
  %s12 = scalar_select 0, %s11, %s9
  %13 = sst [smem:[#allocation3]] %s7
  $region1: #{tpu_custom_call.1} parent=0
    #allocation4 [shape = 'u8[4096]{0}', space=vmem, size = 0x1000, scoped, tag = 'input window, operand 0, single buffered']
    #allocation5 [shape = 's32[1]{0}', space=sflag, size = 0x4, scoped, tag = 'scoped memory for tpu_custom_call.1']
    #allocation6 [shape = 'u8[4096]{0}', space=vmem, size = 0x1000, scoped, tag = 'input window, operand 1, single buffered']
    #allocation7 [shape = 's32[1]{0}', space=sflag, size = 0x4, scoped, tag = 'scoped memory for tpu_custom_call.1']
    #allocation8 [shape = 'u8[16384]{0}', space=vmem, size = 0x4000, scoped, tag = 'input window, operand 2, single buffered']
    #allocation9 [shape = 'u8[393216]{0}', space=vmem, size = 0x60000, scoped, tag = 'input window, operand 4, single buffered']
    #allocation10 [shape = 's32[1]{0}', space=sflag, size = 0x4, scoped, tag = 'scoped memory for tpu_custom_call.1']
    %14 = vsyncpa [#allocation5], 0
    %15 = vsyncpa [#allocation7], 0
    %16 = vsyncpa [#allocation10], 0
    // Predicated region
    $region2: #{tpu_custom_call.1} parent=1 // pred_check
      _
    $region3: #{tpu_custom_call.1} parent=1 // pred_check_branch
      %18 = sbr.rel (0) target = $region5
    $region4: #{tpu_custom_call.1} parent=1 // pred_region
      %s20 = ssub.s32 128, 128
      %21 = vsyncadd [#allocation5], %s20
      %s23 = sshll.u32 [#allocation4], 4
      %s24 = int_to_ptr.vmem [resolvable:$true] %s23
      %26 = dma.hbm_to_vmem [thread:$0]  %s0, 128, %s24, [#allocation5]
    $region5: #{tpu_custom_call.1} parent=1 // pred_fallthru
      _
    // Predicated region
    $region6: #{tpu_custom_call.1} parent=1 // pred_check
      _
    $region7: #{tpu_custom_call.1} parent=1 // pred_check_branch
      %28 = sbr.rel (0) target = $region9
    $region8: #{tpu_custom_call.1} parent=1 // pred_region
      %s30 = ssub.s32 128, 128
      %31 = vsyncadd [#allocation7], %s30
      %s33 = sshll.u32 [#allocation6], 4
      %s34 = int_to_ptr.vmem [resolvable:$true] %s33
      %36 = dma.hbm_to_vmem [thread:$0]  %s1, 128, %s34, [#allocation7]
    $region9: #{tpu_custom_call.1} parent=1 // pred_fallthru
      _
    // Predicated region
    $region10: #{tpu_custom_call.1} parent=1 // pred_check
      _
    $region11: #{tpu_custom_call.1} parent=1 // pred_check_branch
      %38 = sbr.rel (0) target = $region13
    $region12: #{tpu_custom_call.1} parent=1 // pred_region
      %s40 = ssub.s32 512, 512
      %41 = vsyncadd [#allocation7], %s40
      %s42 = sshll.u32 [#allocation8], 4
      %s43 = int_to_ptr.vmem [resolvable:$true] %s42
      %48 = dma.hbm_to_vmem [thread:$0]  %s2, 512, %s43, [#allocation7], 256, 256, 16
    $region13: #{tpu_custom_call.1} parent=1 // pred_fallthru
      _
    // Predicated region
    $region14: #{tpu_custom_call.1} parent=1 // pred_check
      _
    $region15: #{tpu_custom_call.1} parent=1 // pred_check_branch
      %50 = sbr.rel (0) target = $region17
    $region16: #{tpu_custom_call.1} parent=1 // pred_region
      _
    $region17: #{tpu_custom_call.1} parent=1 // pred_fallthru
      _
    // Predicated region
    $region18: #{tpu_custom_call.1} parent=1 // pred_check
      _
    $region19: #{tpu_custom_call.1} parent=1 // pred_check_branch
      %52 = sbr.rel (0) target = $region21
    $region20: #{tpu_custom_call.1} parent=1 // pred_region
      %s54 = ssub.s32 12288, 12288
      %55 = vsyncadd [#allocation10], %s54
      %s56 = sshll.u32 [#allocation9], 4
      %s57 = int_to_ptr.vmem [resolvable:$true] %s56
      %62 = dma.hbm_to_vmem [thread:$0]  %s4, 12288, %s57, [#allocation10], 192, 192, 12
    $region21: #{tpu_custom_call.1} parent=1 // pred_fallthru
      _
    // Predicated region
    $region22: #{tpu_custom_call.1} parent=1 // pred_check
      _
    $region23: #{tpu_custom_call.1} parent=1 // pred_check_branch
      %64 = sbr.rel (0) target = $region25
    $region24: #{tpu_custom_call.1} parent=1 // pred_region
      _
    $region25: #{tpu_custom_call.1} parent=1 // pred_fallthru
      _
    // Predicated region
    $region26: #{tpu_custom_call.1} parent=1 // pred_check
      _
    $region27: #{tpu_custom_call.1} parent=1 // pred_check_branch
      %66 = sbr.rel (0) target = $region29
    $region28: #{tpu_custom_call.1} parent=1 // pred_region
      _
    $region29: #{tpu_custom_call.1} parent=1 // pred_fallthru
      _
    // Predicated region
    $region30: #{tpu_custom_call.1} parent=1 // pred_check
      _
    $region31: #{tpu_custom_call.1} parent=1 // pred_check_branch
      %68 = sbr.rel (0) target = $region33
    $region32: #{tpu_custom_call.1} parent=1 // pred_region
      _
    $region33: #{tpu_custom_call.1} parent=1 // pred_fallthru
      _
    // Predicated region
    $region34: #{tpu_custom_call.1} parent=1 // pred_check
      _
    $region35: #{tpu_custom_call.1} parent=1 // pred_check_branch
      %70 = sbr.rel (0) target = $region37
    $region36: #{tpu_custom_call.1} parent=1 // pred_region
      %71 = dma.done [#allocation5], 128
    $region37: #{tpu_custom_call.1} parent=1 // pred_fallthru
      _
    // Predicated region
    $region38: #{tpu_custom_call.1} parent=1 // pred_check
      _
    $region39: #{tpu_custom_call.1} parent=1 // pred_check_branch
      %73 = sbr.rel (0) target = $region41
    $region40: #{tpu_custom_call.1} parent=1 // pred_region
      %74 = dma.done [#allocation7], 128
    $region41: #{tpu_custom_call.1} parent=1 // pred_fallthru
      _
    // Predicated region
    $region42: #{tpu_custom_call.1} parent=1 // pred_check
      _
    $region43: #{tpu_custom_call.1} parent=1 // pred_check_branch
      %76 = sbr.rel (0) target = $region45
    $region44: #{tpu_custom_call.1} parent=1 // pred_region
      %77 = dma.done [#allocation7], 512
    $region45: #{tpu_custom_call.1} parent=1 // pred_fallthru
      _
    // Predicated region
    $region46: #{tpu_custom_call.1} parent=1 // pred_check
      _
    $region47: #{tpu_custom_call.1} parent=1 // pred_check_branch
      %79 = sbr.rel (0) target = $region49
    $region48: #{tpu_custom_call.1} parent=1 // pred_region
      %80 = dma.done [#allocation10], 12288
    $region49: #{tpu_custom_call.1} parent=1 // pred_fallthru
      _
    %v82 = vld [vmem:[#allocation4] sm:$0xff]
    %v83 = vpack.c.bf16 %v82, %v82
    %v84 = vld [vmem:[#allocation8] sm:$0xff]
    %v85 = vld [vmem:[#allocation8 + $0x8] sm:$0xff]
    %v86 = vld [vmem:[#allocation8 + $0x10] sm:$0xff]
    %v87 = vld [vmem:[#allocation8 + $0x18] sm:$0xff]
    %v88 = vld [vmem:[%s3] sm:$0xf]
    %v90 = vlaneseq
    %v91 = vshrl.u32 %v90, 7
    %v92 = vsub.s32 0, %v91
    %v93 = vrot.slane %v88, %v92
    %v94 = vlaneseq
    %v95 = vshrl.u32 %v94, 7
    %v96 = vsub.s32 1, %v95
    %v97 = vrot.slane %v88, %v96
    %v98 = vlaneseq
    %v99 = vshrl.u32 %v98, 7
    %v100 = vsub.s32 2, %v99
    %v101 = vrot.slane %v88, %v100
    %v102 = vlaneseq
    %v103 = vshrl.u32 %v102, 7
    %v104 = vsub.s32 3, %v103
    %v105 = vrot.slane %v88, %v104
    %v114 = vunpack.c.l.b16 %v84
    %v115 = vunpack.c.h.b16 %v84
    %v116 = vunpack.c.l.b16 %v85
    %v117 = vunpack.c.h.b16 %v85
    %v118 = vunpack.c.l.b16 %v86
    %v119 = vunpack.c.h.b16 %v86
    %v120 = vunpack.c.l.b16 %v87
    %v121 = vunpack.c.h.b16 %v87
    %v122 = vpack.c.b16 %v118, %v114
    %v123 = vpack.c.b16 %v119, %v115
    %v124 = vpack.c.b16 %v120, %v116
    %v125 = vpack.c.b16 %v121, %v117
    %vm130 = vcmask 130048
    %v132 = vsel %vm130, %v83, 0
    %134 = vmatprep.subr.bf16.mxu0 %v123
    %135 = vmatpush1.bf16.msra.mxu0 %v122
    %136 = vmatprep.subr.bf16.mxu0 0
    %137 = vmatpush1.bf16.msra.mxu0 0
    %138 = vmatprep.subr.bf16.mxu0 0
    %139 = vmatpush1.bf16.msra.mxu0 0
    %140 = vmatprep.subr.bf16.mxu0 0
    %141 = vmatpush1.bf16.msra.mxu0 0
    %142 = vmatprep.subr.bf16.mxu0 0
    %143 = vmatpush1.bf16.msra.mxu0 0
    %144 = vmatprep.subr.bf16.mxu0 0
    %145 = vmatpush1.bf16.msra.mxu0 0
    %146 = vmatprep.subr.bf16.mxu0 0
    %147 = vmatpush1.bf16.msra.mxu0 0
    %148 = vmatprep.subr.bf16.mxu0 0
    %149 = vmatpush1.bf16.msra.mxu0 0
    %150 = vmatprep.subr.bf16.mxu0 0
    %151 = vmatpush1.bf16.msra.mxu0 0
    %152 = vmatprep.subr.bf16.mxu0 0
    %153 = vmatpush1.bf16.msra.mxu0 0
    %154 = vmatprep.subr.bf16.mxu0 0
    %155 = vmatpush1.bf16.msra.mxu0 0
    %156 = vmatprep.subr.bf16.mxu0 0
    %157 = vmatpush1.bf16.msra.mxu0 0
    %158 = vmatprep.subr.bf16.mxu0 0
    %159 = vmatpush1.bf16.msra.mxu0 0
    %160 = vmatprep.subr.bf16.mxu0 0
    %161 = vmatpush1.bf16.msra.mxu0 0
    %162 = vmatprep.subr.bf16.mxu0 0
    %163 = vmatpush1.bf16.msra.mxu0 0
    %164 = vmatprep.subr.bf16.mxu0 0
    %165 = vmatpush1.bf16.msra.mxu0 0
    %166 = vmatprep.mubr.bf16.mxu0 0
    %167 = vmatmul.mubr.bf16.gmra.mrb[0].mxu0 %v132
    %v168 = vpop.f32.mrb[0].mxu0
    %v169 = vadd.f32 %v93, %v168
    %v170 = vpop.f32.mrb[0].mxu0
    %v171 = vadd.f32 %v97, %v170
    %v172 = vpop.f32.mrb[0].mxu0
    %v173 = vpop.f32.mrb[0].mxu0
    %174 = vdwg.mxu0
    %175 = vmatprep.subr.bf16.mxu0 %v125
    %176 = vmatpush1.bf16.msra.mxu0 %v124
    %177 = vmatprep.subr.bf16.mxu0 0
    %178 = vmatpush1.bf16.msra.mxu0 0
    %179 = vmatprep.subr.bf16.mxu0 0
    %180 = vmatpush1.bf16.msra.mxu0 0
    %181 = vmatprep.subr.bf16.mxu0 0
    %182 = vmatpush1.bf16.msra.mxu0 0
    %183 = vmatprep.subr.bf16.mxu0 0
    %184 = vmatpush1.bf16.msra.mxu0 0
    %185 = vmatprep.subr.bf16.mxu0 0
    %186 = vmatpush1.bf16.msra.mxu0 0
    %187 = vmatprep.subr.bf16.mxu0 0
    %188 = vmatpush1.bf16.msra.mxu0 0
    %189 = vmatprep.subr.bf16.mxu0 0
    %190 = vmatpush1.bf16.msra.mxu0 0
    %191 = vmatprep.subr.bf16.mxu0 0
    %192 = vmatpush1.bf16.msra.mxu0 0
    %193 = vmatprep.subr.bf16.mxu0 0
    %194 = vmatpush1.bf16.msra.mxu0 0
    %195 = vmatprep.subr.bf16.mxu0 0
    %196 = vmatpush1.bf16.msra.mxu0 0
    %197 = vmatprep.subr.bf16.mxu0 0
    %198 = vmatpush1.bf16.msra.mxu0 0
    %199 = vmatprep.subr.bf16.mxu0 0
    %200 = vmatpush1.bf16.msra.mxu0 0
    %201 = vmatprep.subr.bf16.mxu0 0
    %202 = vmatpush1.bf16.msra.mxu0 0
    %203 = vmatprep.subr.bf16.mxu0 0
    %204 = vmatpush1.bf16.msra.mxu0 0
    %205 = vmatprep.subr.bf16.mxu0 0
    %206 = vmatpush1.bf16.msra.mxu0 0
    %207 = vmatprep.mubr.bf16.mxu0 0
    %208 = vmatmul.mubr.bf16.gmra.mrb[0].mxu0 %v132
    %v209 = vpop.f32.mrb[0].mxu0
    %v210 = vadd.f32 %v101, %v209
    %v211 = vpop.f32.mrb[0].mxu0
    %v212 = vadd.f32 %v105, %v211
    %v213 = vpop.f32.mrb[0].mxu0
    %v214 = vpop.f32.mrb[0].mxu0
    %215 = vdwg.mxu0
    %v216 = vmax.f32 %v169, 0.0
    %v217 = vmax.f32 %v171, 0.0
    %v218 = vmax.f32 %v210, 0.0
    %v219 = vmax.f32 %v212, 0.0
    %220 = vst [vmem:[#allocation2] sm:$0xff] %v216
    %221 = vst [vmem:[#allocation2 + $0x8] sm:$0xff] %v217
    %222 = vst [vmem:[#allocation2 + $0x10] sm:$0xff] %v218
    %223 = vst [vmem:[#allocation2 + $0x18] sm:$0xff] %v219
    %v224 = vld [vmem:[#allocation6] sm:$0xff]
    %226 = vrot.lane.b32.xlu0 %v224, 16
    %v227 = vpop.permute.xlu0 %226
    %vm229 = vcmask 195712
    %230 = vst.msk [vmem:[#allocation2 + $0x18] sm:$0xff] %vm229, %v227
    %v231 = vld [vmem:[#allocation2] sm:$0xff]
    %v232 = vld [vmem:[#allocation2 + $0x8] sm:$0xff]
    %v233 = vld [vmem:[#allocation2 + $0x10] sm:$0xff]
    %v234 = vld [vmem:[#allocation2 + $0x18] sm:$0xff]
    %v235 = vpack.c.bf16 %v231, %v231
    %v236 = vpack.c.bf16 %v232, %v232
    %v237 = vpack.c.bf16 %v233, %v233
    %v238 = vpack.c.bf16 %v234, %v234
    %v239 = vld [vmem:[#allocation9] sm:$0xff]
    %v240 = vld [vmem:[#allocation9 + $0x8] sm:$0xf]
    %v241 = vld [vmem:[#allocation9 + $0xc] sm:$0xff]
    %v242 = vld [vmem:[#allocation9 + $0x14] sm:$0xf]
    %v243 = vld [vmem:[#allocation9 + $0x18] sm:$0xff]
    %v244 = vld [vmem:[#allocation9 + $0x20] sm:$0xf]
    %v245 = vld [vmem:[#allocation9 + $0x24] sm:$0xff]
    %v246 = vld [vmem:[#allocation9 + $0x2c] sm:$0xf]
    %v247 = vld [vmem:[#allocation9 + $0x30] sm:$0xff]
    %v248 = vld [vmem:[#allocation9 + $0x38] sm:$0xf]
    %v249 = vld [vmem:[#allocation9 + $0x3c] sm:$0xff]
    %v250 = vld [vmem:[#allocation9 + $0x44] sm:$0xf]
    %v251 = vld [vmem:[#allocation9 + $0x48] sm:$0xff]
    %v252 = vld [vmem:[#allocation9 + $0x50] sm:$0xf]
    %v253 = vld [vmem:[#allocation9 + $0x54] sm:$0xff]
    %v254 = vld [vmem:[#allocation9 + $0x5c] sm:$0xf]
    %v255 = vld [vmem:[#allocation9 + $0x60] sm:$0xff]
    %v256 = vld [vmem:[#allocation9 + $0x68] sm:$0xf]
    %v257 = vld [vmem:[#allocation9 + $0x6c] sm:$0xff]
    %v258 = vld [vmem:[#allocation9 + $0x74] sm:$0xf]
    %v259 = vld [vmem:[#allocation9 + $0x78] sm:$0xff]
    %v260 = vld [vmem:[#allocation9 + $0x80] sm:$0xf]
    %v261 = vld [vmem:[#allocation9 + $0x84] sm:$0xff]
    %v262 = vld [vmem:[#allocation9 + $0x8c] sm:$0xf]
    %v263 = vld [vmem:[#allocation9 + $0x90] sm:$0xff]
    %v264 = vld [vmem:[#allocation9 + $0x98] sm:$0xf]
    %v265 = vld [vmem:[#allocation9 + $0x9c] sm:$0xff]
    %v266 = vld [vmem:[#allocation9 + $0xa4] sm:$0xf]
    %v267 = vld [vmem:[#allocation9 + $0xa8] sm:$0xff]
    %v268 = vld [vmem:[#allocation9 + $0xb0] sm:$0xf]
    %v269 = vld [vmem:[#allocation9 + $0xb4] sm:$0xff]
    %v270 = vld [vmem:[#allocation9 + $0xbc] sm:$0xf]
    %v271 = vld [vmem:[#allocation9 + $0xc0] sm:$0xff]
    %v272 = vld [vmem:[#allocation9 + $0xc8] sm:$0xf]
    %v273 = vld [vmem:[#allocation9 + $0xcc] sm:$0xff]
    %v274 = vld [vmem:[#allocation9 + $0xd4] sm:$0xf]
    %v275 = vld [vmem:[#allocation9 + $0xd8] sm:$0xff]
    %v276 = vld [vmem:[#allocation9 + $0xe0] sm:$0xf]
    %v277 = vld [vmem:[#allocation9 + $0xe4] sm:$0xff]
    %v278 = vld [vmem:[#allocation9 + $0xec] sm:$0xf]
    %v279 = vld [vmem:[#allocation9 + $0xf0] sm:$0xff]
    %v280 = vld [vmem:[#allocation9 + $0xf8] sm:$0xf]
    %v281 = vld [vmem:[#allocation9 + $0xfc] sm:$0xff]
    %v282 = vld [vmem:[#allocation9 + $0x104] sm:$0xf]
    %v283 = vld [vmem:[#allocation9 + $0x108] sm:$0xff]
    %v284 = vld [vmem:[#allocation9 + $0x110] sm:$0xf]
    %v285 = vld [vmem:[#allocation9 + $0x114] sm:$0xff]
    %v286 = vld [vmem:[#allocation9 + $0x11c] sm:$0xf]
    %v287 = vld [vmem:[#allocation9 + $0x120] sm:$0xff]
    %v288 = vld [vmem:[#allocation9 + $0x128] sm:$0xf]
    %v289 = vld [vmem:[#allocation9 + $0x12c] sm:$0xff]
    %v290 = vld [vmem:[#allocation9 + $0x134] sm:$0xf]
    %v291 = vld [vmem:[#allocation9 + $0x138] sm:$0xff]
    %v292 = vld [vmem:[#allocation9 + $0x140] sm:$0xf]
    %v293 = vld [vmem:[#allocation9 + $0x144] sm:$0xff]
    %v294 = vld [vmem:[#allocation9 + $0x14c] sm:$0xf]
    %v295 = vld [vmem:[#allocation9 + $0x150] sm:$0xff]
    %v296 = vld [vmem:[#allocation9 + $0x158] sm:$0xf]
    %v297 = vld [vmem:[#allocation9 + $0x15c] sm:$0xff]
    %v298 = vld [vmem:[#allocation9 + $0x164] sm:$0xf]
    %v299 = vld [vmem:[#allocation9 + $0x168] sm:$0xff]
    %v300 = vld [vmem:[#allocation9 + $0x170] sm:$0xf]
    %v301 = vld [vmem:[#allocation9 + $0x174] sm:$0xff]
    %v302 = vld [vmem:[#allocation9 + $0x17c] sm:$0xf]
    %v303 = vld [vmem:[#allocation9 + $0x180] sm:$0xff]
    %v304 = vld [vmem:[#allocation9 + $0x188] sm:$0xf]
    %v305 = vld [vmem:[#allocation9 + $0x18c] sm:$0xff]
    %v306 = vld [vmem:[#allocation9 + $0x194] sm:$0xf]
    %v307 = vld [vmem:[#allocation9 + $0x198] sm:$0xff]
    %v308 = vld [vmem:[#allocation9 + $0x1a0] sm:$0xf]
    %v309 = vld [vmem:[#allocation9 + $0x1a4] sm:$0xff]
    %v310 = vld [vmem:[#allocation9 + $0x1ac] sm:$0xf]
    %v311 = vld [vmem:[#allocation9 + $0x1b0] sm:$0xff]
    %v312 = vld [vmem:[#allocation9 + $0x1b8] sm:$0xf]
    %v313 = vld [vmem:[#allocation9 + $0x1bc] sm:$0xff]
    %v314 = vld [vmem:[#allocation9 + $0x1c4] sm:$0xf]
    %v315 = vld [vmem:[#allocation9 + $0x1c8] sm:$0xff]
    %v316 = vld [vmem:[#allocation9 + $0x1d0] sm:$0xf]
    %v317 = vld [vmem:[#allocation9 + $0x1d4] sm:$0xff]
    %v318 = vld [vmem:[#allocation9 + $0x1dc] sm:$0xf]
    %v319 = vld [vmem:[#allocation9 + $0x1e0] sm:$0xff]
    %v320 = vld [vmem:[#allocation9 + $0x1e8] sm:$0xf]
    %v321 = vld [vmem:[#allocation9 + $0x1ec] sm:$0xff]
    %v322 = vld [vmem:[#allocation9 + $0x1f4] sm:$0xf]
    %v323 = vld [vmem:[#allocation9 + $0x1f8] sm:$0xff]
    %v324 = vld [vmem:[#allocation9 + $0x200] sm:$0xf]
    %v325 = vld [vmem:[#allocation9 + $0x204] sm:$0xff]
    %v326 = vld [vmem:[#allocation9 + $0x20c] sm:$0xf]
    %v327 = vld [vmem:[#allocation9 + $0x210] sm:$0xff]
    %v328 = vld [vmem:[#allocation9 + $0x218] sm:$0xf]
    %v329 = vld [vmem:[#allocation9 + $0x21c] sm:$0xff]
    %v330 = vld [vmem:[#allocation9 + $0x224] sm:$0xf]
    %v331 = vld [vmem:[#allocation9 + $0x228] sm:$0xff]
    %v332 = vld [vmem:[#allocation9 + $0x230] sm:$0xf]
    %v333 = vld [vmem:[#allocation9 + $0x234] sm:$0xff]
    %v334 = vld [vmem:[#allocation9 + $0x23c] sm:$0xf]
    %v335 = vld [vmem:[#allocation9 + $0x240] sm:$0xff]
    %v336 = vld [vmem:[#allocation9 + $0x248] sm:$0xf]
    %v337 = vld [vmem:[#allocation9 + $0x24c] sm:$0xff]
    %v338 = vld [vmem:[#allocation9 + $0x254] sm:$0xf]
    %v339 = vld [vmem:[#allocation9 + $0x258] sm:$0xff]
    %v340 = vld [vmem:[#allocation9 + $0x260] sm:$0xf]
    %v341 = vld [vmem:[#allocation9 + $0x264] sm:$0xff]
    %v342 = vld [vmem:[#allocation9 + $0x26c] sm:$0xf]
    %v343 = vld [vmem:[#allocation9 + $0x270] sm:$0xff]
    %v344 = vld [vmem:[#allocation9 + $0x278] sm:$0xf]
    %v345 = vld [vmem:[#allocation9 + $0x27c] sm:$0xff]
    %v346 = vld [vmem:[#allocation9 + $0x284] sm:$0xf]
    %v347 = vld [vmem:[#allocation9 + $0x288] sm:$0xff]
    %v348 = vld [vmem:[#allocation9 + $0x290] sm:$0xf]
    %v349 = vld [vmem:[#allocation9 + $0x294] sm:$0xff]
    %v350 = vld [vmem:[#allocation9 + $0x29c] sm:$0xf]
    %v351 = vld [vmem:[#allocation9 + $0x2a0] sm:$0xff]
    %v352 = vld [vmem:[#allocation9 + $0x2a8] sm:$0xf]
    %v353 = vld [vmem:[#allocation9 + $0x2ac] sm:$0xff]
    %v354 = vld [vmem:[#allocation9 + $0x2b4] sm:$0xf]
    %v355 = vld [vmem:[#allocation9 + $0x2b8] sm:$0xff]
    %v356 = vld [vmem:[#allocation9 + $0x2c0] sm:$0xf]
    %v357 = vld [vmem:[#allocation9 + $0x2c4] sm:$0xff]
    %v358 = vld [vmem:[#allocation9 + $0x2cc] sm:$0xf]
    %v359 = vld [vmem:[#allocation9 + $0x2d0] sm:$0xff]
    %v360 = vld [vmem:[#allocation9 + $0x2d8] sm:$0xf]
    %v361 = vld [vmem:[#allocation9 + $0x2dc] sm:$0xff]
    %v362 = vld [vmem:[#allocation9 + $0x2e4] sm:$0xf]
    %v363 = vld [vmem:[#allocation9 + $0x2e8] sm:$0xff]
    %v364 = vld [vmem:[#allocation9 + $0x2f0] sm:$0xf]
    %v365 = vld [vmem:[#allocation9 + $0x2f4] sm:$0xff]
    %v366 = vld [vmem:[#allocation9 + $0x2fc] sm:$0xf]
    %v367 = vld [vmem:[%s5] sm:$0x7]
    %v369 = vlaneseq
    %v370 = vshrl.u32 %v369, 7
    %v371 = vsub.s32 0, %v370
    %v372 = vrot.slane %v367, %v371
    %v373 = vlaneseq
    %v374 = vshrl.u32 %v373, 7
    %v375 = vsub.s32 1, %v374
    %v376 = vrot.slane %v367, %v375
    %v377 = vlaneseq
    %v378 = vshrl.u32 %v377, 7
    %v379 = vsub.s32 2, %v378
    %v380 = vrot.slane %v367, %v379
    %v512 = vunpack.c.l.b16 %v239
    %v513 = vunpack.c.h.b16 %v239
    %v514 = vunpack.c.l.b16 %v240
    %v515 = vunpack.c.l.b16 %v241
    %v516 = vunpack.c.h.b16 %v241
    %v517 = vunpack.c.l.b16 %v242
    %v518 = vunpack.c.l.b16 %v243
    %v519 = vunpack.c.h.b16 %v243
    %v520 = vunpack.c.l.b16 %v244
    %v521 = vunpack.c.l.b16 %v245
    %v522 = vunpack.c.h.b16 %v245
    %v523 = vunpack.c.l.b16 %v246
    %v524 = vunpack.c.l.b16 %v247
    %v525 = vunpack.c.h.b16 %v247
    %v526 = vunpack.c.l.b16 %v248
    %v527 = vunpack.c.l.b16 %v249
    %v528 = vunpack.c.h.b16 %v249
    %v529 = vunpack.c.l.b16 %v250
    %v530 = vunpack.c.l.b16 %v251
    %v531 = vunpack.c.h.b16 %v251
    %v532 = vunpack.c.l.b16 %v252
    %v533 = vunpack.c.l.b16 %v253
    %v534 = vunpack.c.h.b16 %v253
    %v535 = vunpack.c.l.b16 %v254
    %v536 = vunpack.c.l.b16 %v255
    %v537 = vunpack.c.h.b16 %v255
    %v538 = vunpack.c.l.b16 %v256
    %v539 = vunpack.c.l.b16 %v257
    %v540 = vunpack.c.h.b16 %v257
    %v541 = vunpack.c.l.b16 %v258
    %v542 = vunpack.c.l.b16 %v259
    %v543 = vunpack.c.h.b16 %v259
    %v544 = vunpack.c.l.b16 %v260
    %v545 = vunpack.c.l.b16 %v261
    %v546 = vunpack.c.h.b16 %v261
    %v547 = vunpack.c.l.b16 %v262
    %v548 = vunpack.c.l.b16 %v263
    %v549 = vunpack.c.h.b16 %v263
    %v550 = vunpack.c.l.b16 %v264
    %v551 = vunpack.c.l.b16 %v265
    %v552 = vunpack.c.h.b16 %v265
    %v553 = vunpack.c.l.b16 %v266
    %v554 = vunpack.c.l.b16 %v267
    %v555 = vunpack.c.h.b16 %v267
    %v556 = vunpack.c.l.b16 %v268
    %v557 = vunpack.c.l.b16 %v269
    %v558 = vunpack.c.h.b16 %v269
    %v559 = vunpack.c.l.b16 %v270
    %v560 = vunpack.c.l.b16 %v271
    %v561 = vunpack.c.h.b16 %v271
    %v562 = vunpack.c.l.b16 %v272
    %v563 = vunpack.c.l.b16 %v273
    %v564 = vunpack.c.h.b16 %v273
    %v565 = vunpack.c.l.b16 %v274
    %v566 = vunpack.c.l.b16 %v275
    %v567 = vunpack.c.h.b16 %v275
    %v568 = vunpack.c.l.b16 %v276
    %v569 = vunpack.c.l.b16 %v277
    %v570 = vunpack.c.h.b16 %v277
    %v571 = vunpack.c.l.b16 %v278
    %v572 = vunpack.c.l.b16 %v279
    %v573 = vunpack.c.h.b16 %v279
    %v574 = vunpack.c.l.b16 %v280
    %v575 = vunpack.c.l.b16 %v281
    %v576 = vunpack.c.h.b16 %v281
    %v577 = vunpack.c.l.b16 %v282
    %v578 = vunpack.c.l.b16 %v283
    %v579 = vunpack.c.h.b16 %v283
    %v580 = vunpack.c.l.b16 %v284
    %v581 = vunpack.c.l.b16 %v285
    %v582 = vunpack.c.h.b16 %v285
    %v583 = vunpack.c.l.b16 %v286
    %v584 = vunpack.c.l.b16 %v287
    %v585 = vunpack.c.h.b16 %v287
    %v586 = vunpack.c.l.b16 %v288
    %v587 = vunpack.c.l.b16 %v289
    %v588 = vunpack.c.h.b16 %v289
    %v589 = vunpack.c.l.b16 %v290
    %v590 = vunpack.c.l.b16 %v291
    %v591 = vunpack.c.h.b16 %v291
    %v592 = vunpack.c.l.b16 %v292
    %v593 = vunpack.c.l.b16 %v293
    %v594 = vunpack.c.h.b16 %v293
    %v595 = vunpack.c.l.b16 %v294
    %v596 = vunpack.c.l.b16 %v295
    %v597 = vunpack.c.h.b16 %v295
    %v598 = vunpack.c.l.b16 %v296
    %v599 = vunpack.c.l.b16 %v297
    %v600 = vunpack.c.h.b16 %v297
    %v601 = vunpack.c.l.b16 %v298
    %v602 = vunpack.c.l.b16 %v299
    %v603 = vunpack.c.h.b16 %v299
    %v604 = vunpack.c.l.b16 %v300
    %v605 = vunpack.c.l.b16 %v301
    %v606 = vunpack.c.h.b16 %v301
    %v607 = vunpack.c.l.b16 %v302
    %v608 = vunpack.c.l.b16 %v303
    %v609 = vunpack.c.h.b16 %v303
    %v610 = vunpack.c.l.b16 %v304
    %v611 = vunpack.c.l.b16 %v305
    %v612 = vunpack.c.h.b16 %v305
    %v613 = vunpack.c.l.b16 %v306
    %v614 = vunpack.c.l.b16 %v307
    %v615 = vunpack.c.h.b16 %v307
    %v616 = vunpack.c.l.b16 %v308
    %v617 = vunpack.c.l.b16 %v309
    %v618 = vunpack.c.h.b16 %v309
    %v619 = vunpack.c.l.b16 %v310
    %v620 = vunpack.c.l.b16 %v311
    %v621 = vunpack.c.h.b16 %v311
    %v622 = vunpack.c.l.b16 %v312
    %v623 = vunpack.c.l.b16 %v313
    %v624 = vunpack.c.h.b16 %v313
    %v625 = vunpack.c.l.b16 %v314
    %v626 = vunpack.c.l.b16 %v315
    %v627 = vunpack.c.h.b16 %v315
    %v628 = vunpack.c.l.b16 %v316
    %v629 = vunpack.c.l.b16 %v317
    %v630 = vunpack.c.h.b16 %v317
    %v631 = vunpack.c.l.b16 %v318
    %v632 = vunpack.c.l.b16 %v319
    %v633 = vunpack.c.h.b16 %v319
    %v634 = vunpack.c.l.b16 %v320
    %v635 = vunpack.c.l.b16 %v321
    %v636 = vunpack.c.h.b16 %v321
    %v637 = vunpack.c.l.b16 %v322
    %v638 = vunpack.c.l.b16 %v323
    %v639 = vunpack.c.h.b16 %v323
    %v640 = vunpack.c.l.b16 %v324
    %v641 = vunpack.c.l.b16 %v325
    %v642 = vunpack.c.h.b16 %v325
    %v643 = vunpack.c.l.b16 %v326
    %v644 = vunpack.c.l.b16 %v327
    %v645 = vunpack.c.h.b16 %v327
    %v646 = vunpack.c.l.b16 %v328
    %v647 = vunpack.c.l.b16 %v329
    %v648 = vunpack.c.h.b16 %v329
    %v649 = vunpack.c.l.b16 %v330
    %v650 = vunpack.c.l.b16 %v331
    %v651 = vunpack.c.h.b16 %v331
    %v652 = vunpack.c.l.b16 %v332
    %v653 = vunpack.c.l.b16 %v333
    %v654 = vunpack.c.h.b16 %v333
    %v655 = vunpack.c.l.b16 %v334
    %v656 = vunpack.c.l.b16 %v335
    %v657 = vunpack.c.h.b16 %v335
    %v658 = vunpack.c.l.b16 %v336
    %v659 = vunpack.c.l.b16 %v337
    %v660 = vunpack.c.h.b16 %v337
    %v661 = vunpack.c.l.b16 %v338
    %v662 = vunpack.c.l.b16 %v339
    %v663 = vunpack.c.h.b16 %v339
    %v664 = vunpack.c.l.b16 %v340
    %v665 = vunpack.c.l.b16 %v341
    %v666 = vunpack.c.h.b16 %v341
    %v667 = vunpack.c.l.b16 %v342
    %v668 = vunpack.c.l.b16 %v343
    %v669 = vunpack.c.h.b16 %v343
    %v670 = vunpack.c.l.b16 %v344
    %v671 = vunpack.c.l.b16 %v345
    %v672 = vunpack.c.h.b16 %v345
    %v673 = vunpack.c.l.b16 %v346
    %v674 = vunpack.c.l.b16 %v347
    %v675 = vunpack.c.h.b16 %v347
    %v676 = vunpack.c.l.b16 %v348
    %v677 = vunpack.c.l.b16 %v349
    %v678 = vunpack.c.h.b16 %v349
    %v679 = vunpack.c.l.b16 %v350
    %v680 = vunpack.c.l.b16 %v351
    %v681 = vunpack.c.h.b16 %v351
    %v682 = vunpack.c.l.b16 %v352
    %v683 = vunpack.c.l.b16 %v353
    %v684 = vunpack.c.h.b16 %v353
    %v685 = vunpack.c.l.b16 %v354
    %v686 = vunpack.c.l.b16 %v355
    %v687 = vunpack.c.h.b16 %v355
    %v688 = vunpack.c.l.b16 %v356
    %v689 = vunpack.c.l.b16 %v357
    %v690 = vunpack.c.h.b16 %v357
    %v691 = vunpack.c.l.b16 %v358
    %v692 = vunpack.c.l.b16 %v359
    %v693 = vunpack.c.h.b16 %v359
    %v694 = vunpack.c.l.b16 %v360
    %v695 = vunpack.c.l.b16 %v361
    %v696 = vunpack.c.h.b16 %v361
    %v697 = vunpack.c.l.b16 %v362
    %v698 = vunpack.c.l.b16 %v363
    %v699 = vunpack.c.h.b16 %v363
    %v700 = vunpack.c.l.b16 %v364
    %v701 = vunpack.c.l.b16 %v365
    %v702 = vunpack.c.h.b16 %v365
    %v703 = vunpack.c.l.b16 %v366
    %v704 = vpack.c.b16 %v515, %v512
    %v705 = vpack.c.b16 %v516, %v513
    %v706 = vpack.c.b16 %v517, %v514
    %v707 = vpack.c.b16 %v521, %v518
    %v708 = vpack.c.b16 %v522, %v519
    %v709 = vpack.c.b16 %v523, %v520
    %v710 = vpack.c.b16 %v527, %v524
    %v711 = vpack.c.b16 %v528, %v525
    %v712 = vpack.c.b16 %v529, %v526
    %v713 = vpack.c.b16 %v533, %v530
    %v714 = vpack.c.b16 %v534, %v531
    %v715 = vpack.c.b16 %v535, %v532
    %v716 = vpack.c.b16 %v539, %v536
    %v717 = vpack.c.b16 %v540, %v537
    %v718 = vpack.c.b16 %v541, %v538
    %v719 = vpack.c.b16 %v545, %v542
    %v720 = vpack.c.b16 %v546, %v543
    %v721 = vpack.c.b16 %v547, %v544
    %v722 = vpack.c.b16 %v551, %v548
    %v723 = vpack.c.b16 %v552, %v549
    %v724 = vpack.c.b16 %v553, %v550
    %v725 = vpack.c.b16 %v557, %v554
    %v726 = vpack.c.b16 %v558, %v555
    %v727 = vpack.c.b16 %v559, %v556
    %v728 = vpack.c.b16 %v563, %v560
    %v729 = vpack.c.b16 %v564, %v561
    %v730 = vpack.c.b16 %v565, %v562
    %v731 = vpack.c.b16 %v569, %v566
    %v732 = vpack.c.b16 %v570, %v567
    %v733 = vpack.c.b16 %v571, %v568
    %v734 = vpack.c.b16 %v575, %v572
    %v735 = vpack.c.b16 %v576, %v573
    %v736 = vpack.c.b16 %v577, %v574
    %v737 = vpack.c.b16 %v581, %v578
    %v738 = vpack.c.b16 %v582, %v579
    %v739 = vpack.c.b16 %v583, %v580
    %v740 = vpack.c.b16 %v587, %v584
    %v741 = vpack.c.b16 %v588, %v585
    %v742 = vpack.c.b16 %v589, %v586
    %v743 = vpack.c.b16 %v593, %v590
    %v744 = vpack.c.b16 %v594, %v591
    %v745 = vpack.c.b16 %v595, %v592
    %v746 = vpack.c.b16 %v599, %v596
    %v747 = vpack.c.b16 %v600, %v597
    %v748 = vpack.c.b16 %v601, %v598
    %v749 = vpack.c.b16 %v605, %v602
    %v750 = vpack.c.b16 %v606, %v603
    %v751 = vpack.c.b16 %v607, %v604
    %v752 = vpack.c.b16 %v611, %v608
    %v753 = vpack.c.b16 %v612, %v609
    %v754 = vpack.c.b16 %v613, %v610
    %v755 = vpack.c.b16 %v617, %v614
    %v756 = vpack.c.b16 %v618, %v615
    %v757 = vpack.c.b16 %v619, %v616
    %v758 = vpack.c.b16 %v623, %v620
    %v759 = vpack.c.b16 %v624, %v621
    %v760 = vpack.c.b16 %v625, %v622
    %v761 = vpack.c.b16 %v629, %v626
    %v762 = vpack.c.b16 %v630, %v627
    %v763 = vpack.c.b16 %v631, %v628
    %v764 = vpack.c.b16 %v635, %v632
    %v765 = vpack.c.b16 %v636, %v633
    %v766 = vpack.c.b16 %v637, %v634
    %v767 = vpack.c.b16 %v641, %v638
    %v768 = vpack.c.b16 %v642, %v639
    %v769 = vpack.c.b16 %v643, %v640
    %v770 = vpack.c.b16 %v647, %v644
    %v771 = vpack.c.b16 %v648, %v645
    %v772 = vpack.c.b16 %v649, %v646
    %v773 = vpack.c.b16 %v653, %v650
    %v774 = vpack.c.b16 %v654, %v651
    %v775 = vpack.c.b16 %v655, %v652
    %v776 = vpack.c.b16 %v659, %v656
    %v777 = vpack.c.b16 %v660, %v657
    %v778 = vpack.c.b16 %v661, %v658
    %v779 = vpack.c.b16 %v665, %v662
    %v780 = vpack.c.b16 %v666, %v663
    %v781 = vpack.c.b16 %v667, %v664
    %v782 = vpack.c.b16 %v671, %v668
    %v783 = vpack.c.b16 %v672, %v669
    %v784 = vpack.c.b16 %v673, %v670
    %v785 = vpack.c.b16 %v677, %v674
    %v786 = vpack.c.b16 %v678, %v675
    %v787 = vpack.c.b16 %v679, %v676
    %v788 = vpack.c.b16 %v683, %v680
    %v789 = vpack.c.b16 %v684, %v681
    %v790 = vpack.c.b16 %v685, %v682
    %v791 = vpack.c.b16 %v689, %v686
    %v792 = vpack.c.b16 %v690, %v687
    %v793 = vpack.c.b16 %v691, %v688
    %v794 = vpack.c.b16 %v695, %v692
    %v795 = vpack.c.b16 %v696, %v693
    %v796 = vpack.c.b16 %v697, %v694
    %v797 = vpack.c.b16 %v701, %v698
    %v798 = vpack.c.b16 %v702, %v699
    %v799 = vpack.c.b16 %v703, %v700
    %896 = vmatprep.subr.bf16.mxu0 %v705
    %897 = vmatpush1.bf16.msra.mxu0 %v704
    %898 = vmatprep.subr.bf16.mxu0 %v708
    %899 = vmatpush1.bf16.msra.mxu0 %v707
    %900 = vmatprep.subr.bf16.mxu0 %v711
    %901 = vmatpush1.bf16.msra.mxu0 %v710
    %902 = vmatprep.subr.bf16.mxu0 %v714
    %903 = vmatpush1.bf16.msra.mxu0 %v713
    %904 = vmatprep.subr.bf16.mxu0 %v717
    %905 = vmatpush1.bf16.msra.mxu0 %v716
    %906 = vmatprep.subr.bf16.mxu0 %v720
    %907 = vmatpush1.bf16.msra.mxu0 %v719
    %908 = vmatprep.subr.bf16.mxu0 %v723
    %909 = vmatpush1.bf16.msra.mxu0 %v722
    %910 = vmatprep.subr.bf16.mxu0 %v726
    %911 = vmatpush1.bf16.msra.mxu0 %v725
    %912 = vmatprep.subr.bf16.mxu0 %v729
    %913 = vmatpush1.bf16.msra.mxu0 %v728
    %914 = vmatprep.subr.bf16.mxu0 %v732
    %915 = vmatpush1.bf16.msra.mxu0 %v731
    %916 = vmatprep.subr.bf16.mxu0 %v735
    %917 = vmatpush1.bf16.msra.mxu0 %v734
    %918 = vmatprep.subr.bf16.mxu0 %v738
    %919 = vmatpush1.bf16.msra.mxu0 %v737
    %920 = vmatprep.subr.bf16.mxu0 %v741
    %921 = vmatpush1.bf16.msra.mxu0 %v740
    %922 = vmatprep.subr.bf16.mxu0 %v744
    %923 = vmatpush1.bf16.msra.mxu0 %v743
    %924 = vmatprep.subr.bf16.mxu0 %v747
    %925 = vmatpush1.bf16.msra.mxu0 %v746
    %926 = vmatprep.subr.bf16.mxu0 %v750
    %927 = vmatpush1.bf16.msra.mxu0 %v749
    %928 = vmatprep.mubr.bf16.mxu0 %v236
    %929 = vmatmul.mubr.bf16.gmra.mrb[0].mxu0 %v235
    %v930 = vpop.f32.mrb[0].mxu0
    %v931 = vadd.f32 %v372, %v930
    %v932 = vpop.f32.mrb[0].mxu0
    %v933 = vadd.f32 %v376, %v932
    %v934 = vpop.f32.mrb[0].mxu0
    %v935 = vpop.f32.mrb[0].mxu0
    %936 = vdwg.mxu0
    %937 = vmatprep.subr.bf16.mxu0 %v753
    %938 = vmatpush1.bf16.msra.mxu0 %v752
    %939 = vmatprep.subr.bf16.mxu0 %v756
    %940 = vmatpush1.bf16.msra.mxu0 %v755
    %941 = vmatprep.subr.bf16.mxu0 %v759
    %942 = vmatpush1.bf16.msra.mxu0 %v758
    %943 = vmatprep.subr.bf16.mxu0 %v762
    %944 = vmatpush1.bf16.msra.mxu0 %v761
    %945 = vmatprep.subr.bf16.mxu0 %v765
    %946 = vmatpush1.bf16.msra.mxu0 %v764
    %947 = vmatprep.subr.bf16.mxu0 %v768
    %948 = vmatpush1.bf16.msra.mxu0 %v767
    %949 = vmatprep.subr.bf16.mxu0 %v771
    %950 = vmatpush1.bf16.msra.mxu0 %v770
    %951 = vmatprep.subr.bf16.mxu0 %v774
    %952 = vmatpush1.bf16.msra.mxu0 %v773
    %953 = vmatprep.subr.bf16.mxu0 %v777
    %954 = vmatpush1.bf16.msra.mxu0 %v776
    %955 = vmatprep.subr.bf16.mxu0 %v780
    %956 = vmatpush1.bf16.msra.mxu0 %v779
    %957 = vmatprep.subr.bf16.mxu0 %v783
    %958 = vmatpush1.bf16.msra.mxu0 %v782
    %959 = vmatprep.subr.bf16.mxu0 %v786
    %960 = vmatpush1.bf16.msra.mxu0 %v785
    %961 = vmatprep.subr.bf16.mxu0 %v789
    %962 = vmatpush1.bf16.msra.mxu0 %v788
    %963 = vmatprep.subr.bf16.mxu0 %v792
    %964 = vmatpush1.bf16.msra.mxu0 %v791
    %965 = vmatprep.subr.bf16.mxu0 %v795
    %966 = vmatpush1.bf16.msra.mxu0 %v794
    %967 = vmatprep.subr.bf16.mxu0 %v798
    %968 = vmatpush1.bf16.msra.mxu0 %v797
    %969 = vmatprep.mubr.bf16.mxu0 %v238
    %970 = vmatmul.mubr.bf16.gmra.mrb[0].mxu0 %v237
    %v971 = vpop.f32.mrb[0].mxu0
    %v972 = vadd.f32 %v931, %v971
    %v973 = vpop.f32.mrb[0].mxu0
    %v974 = vadd.f32 %v933, %v973
    %v975 = vpop.f32.mrb[0].mxu0
    %v976 = vpop.f32.mrb[0].mxu0
    %977 = vdwg.mxu0
    %978 = vmatprep.subr.bf16.mxu0 0
    %979 = vmatpush1.bf16.msra.mxu0 %v706
    %980 = vmatprep.subr.bf16.mxu0 0
    %981 = vmatpush1.bf16.msra.mxu0 %v709
    %982 = vmatprep.subr.bf16.mxu0 0
    %983 = vmatpush1.bf16.msra.mxu0 %v712
    %984 = vmatprep.subr.bf16.mxu0 0
    %985 = vmatpush1.bf16.msra.mxu0 %v715
    %986 = vmatprep.subr.bf16.mxu0 0
    %987 = vmatpush1.bf16.msra.mxu0 %v718
    %988 = vmatprep.subr.bf16.mxu0 0
    %989 = vmatpush1.bf16.msra.mxu0 %v721
    %990 = vmatprep.subr.bf16.mxu0 0
    %991 = vmatpush1.bf16.msra.mxu0 %v724
    %992 = vmatprep.subr.bf16.mxu0 0
    %993 = vmatpush1.bf16.msra.mxu0 %v727
    %994 = vmatprep.subr.bf16.mxu0 0
    %995 = vmatpush1.bf16.msra.mxu0 %v730
    %996 = vmatprep.subr.bf16.mxu0 0
    %997 = vmatpush1.bf16.msra.mxu0 %v733
    %998 = vmatprep.subr.bf16.mxu0 0
    %999 = vmatpush1.bf16.msra.mxu0 %v736
    %1000 = vmatprep.subr.bf16.mxu0 0
    %1001 = vmatpush1.bf16.msra.mxu0 %v739
    %1002 = vmatprep.subr.bf16.mxu0 0
    %1003 = vmatpush1.bf16.msra.mxu0 %v742
    %1004 = vmatprep.subr.bf16.mxu0 0
    %1005 = vmatpush1.bf16.msra.mxu0 %v745
    %1006 = vmatprep.subr.bf16.mxu0 0
    %1007 = vmatpush1.bf16.msra.mxu0 %v748
    %1008 = vmatprep.subr.bf16.mxu0 0
    %1009 = vmatpush1.bf16.msra.mxu0 %v751
    %1010 = vmatprep.mubr.bf16.mxu0 %v236
    %1011 = vmatmul.mubr.bf16.gmra.mrb[0].mxu0 %v235
    %v1012 = vpop.f32.mrb[0].mxu0
    %v1013 = vadd.f32 %v380, %v1012
    %v1014 = vpop.f32.mrb[0].mxu0
    %v1015 = vpop.f32.mrb[0].mxu0
    %v1016 = vpop.f32.mrb[0].mxu0
    %1017 = vdwg.mxu0
    %1018 = vmatprep.subr.bf16.mxu0 0
    %1019 = vmatpush1.bf16.msra.mxu0 %v754
    %1020 = vmatprep.subr.bf16.mxu0 0
    %1021 = vmatpush1.bf16.msra.mxu0 %v757
    %1022 = vmatprep.subr.bf16.mxu0 0
    %1023 = vmatpush1.bf16.msra.mxu0 %v760
    %1024 = vmatprep.subr.bf16.mxu0 0
    %1025 = vmatpush1.bf16.msra.mxu0 %v763
    %1026 = vmatprep.subr.bf16.mxu0 0
    %1027 = vmatpush1.bf16.msra.mxu0 %v766
    %1028 = vmatprep.subr.bf16.mxu0 0
    %1029 = vmatpush1.bf16.msra.mxu0 %v769
    %1030 = vmatprep.subr.bf16.mxu0 0
    %1031 = vmatpush1.bf16.msra.mxu0 %v772
    %1032 = vmatprep.subr.bf16.mxu0 0
    %1033 = vmatpush1.bf16.msra.mxu0 %v775
    %1034 = vmatprep.subr.bf16.mxu0 0
    %1035 = vmatpush1.bf16.msra.mxu0 %v778
    %1036 = vmatprep.subr.bf16.mxu0 0
    %1037 = vmatpush1.bf16.msra.mxu0 %v781
    %1038 = vmatprep.subr.bf16.mxu0 0
    %1039 = vmatpush1.bf16.msra.mxu0 %v784
    %1040 = vmatprep.subr.bf16.mxu0 0
    %1041 = vmatpush1.bf16.msra.mxu0 %v787
    %1042 = vmatprep.subr.bf16.mxu0 0
    %1043 = vmatpush1.bf16.msra.mxu0 %v790
    %1044 = vmatprep.subr.bf16.mxu0 0
    %1045 = vmatpush1.bf16.msra.mxu0 %v793
    %1046 = vmatprep.subr.bf16.mxu0 0
    %1047 = vmatpush1.bf16.msra.mxu0 %v796
    %1048 = vmatprep.subr.bf16.mxu0 0
    %1049 = vmatpush1.bf16.msra.mxu0 %v799
    %1050 = vmatprep.mubr.bf16.mxu0 %v238
    %1051 = vmatmul.mubr.bf16.gmra.mrb[0].mxu0 %v237
    %v1052 = vpop.f32.mrb[0].mxu0
    %v1053 = vadd.f32 %v1013, %v1052
    %v1054 = vpop.f32.mrb[0].mxu0
    %v1055 = vpop.f32.mrb[0].mxu0
    %v1056 = vpop.f32.mrb[0].mxu0
    %1057 = vdwg.mxu0
    %v1058 = vmax.f32 %v972, 0.0
    %v1059 = vmax.f32 %v974, 0.0
    %v1060 = vmax.f32 %v1053, 0.0
    %v1061 = vld [vmem:[%s6] sm:$0x7]
    %v1063 = vlaneseq
    %v1064 = vshrl.u32 %v1063, 7
    %v1065 = vsub.s32 0, %v1064
    %v1066 = vrot.slane %v1061, %v1065
    %v1067 = vlaneseq
    %v1068 = vshrl.u32 %v1067, 7
    %v1069 = vsub.s32 1, %v1068
    %v1070 = vrot.slane %v1061, %v1069
    %v1071 = vlaneseq
    %v1072 = vshrl.u32 %v1071, 7
    %v1073 = vsub.s32 2, %v1072
    %v1074 = vrot.slane %v1061, %v1073
    %v1078 = vmul.f32 %v1058, %v1066
    %v1079 = vmul.f32 %v1059, %v1070
    %v1080 = vmul.f32 %v1060, %v1074
    %v1081 = vadd.f32 %v1078, %v1079
    %v1082 = vadd.f32 %v1081, %v1080
    %1083 = vadd.xlane.f32.xlu0 %v1082
    %v1084 = vpop.xlane.xlu0 %1083
    %s1085 = sld [smem:[#allocation3]]
    %v1086 = vstv %s1085
    %v1087 = vadd.f32 %v1084, %v1086
    %vm1088 = vcmask 7168
    %1089 = vst.msk [vmem:[%s8] sm:$0xff] %vm1088, %v1087
    // Predicated region
    $region50: #{tpu_custom_call.1} parent=1 // pred_check
      _
    $region51: #{tpu_custom_call.1} parent=1 // pred_check_branch
      %1091 = sbr.rel (0) target = $region53
    $region52: #{tpu_custom_call.1} parent=1 // pred_region
      _
    $region53: #{tpu_custom_call.1} parent=1 // pred_fallthru
      _
    // Predicated region
    $region54: #{tpu_custom_call.1} parent=1 // pred_check
      _
    $region55: #{tpu_custom_call.1} parent=1 // pred_check_branch
      %1093 = sbr.rel (0) target = $region57
    $region56: #{tpu_custom_call.1} parent=1 // pred_region
      _
    $region57: #{tpu_custom_call.1} parent=1 // pred_fallthru
      _
    %1094 = vsyncpa [#allocation5], 1
    %1095 = vsyncpa [#allocation7], 1
    %1096 = vsyncpa [#allocation10], 1

</llo_original>
